<compile_context>
chip_gen: v7x
topology: tpu7x:2x2x1
jax: 0.10.0
libtpu: 0.0.40
codegen_flags: <defaults>
</compile_context>

<pallas_src>
import functools

import jax
import jax.numpy as jnp
from jax.experimental import pallas as pl
from jax.experimental.pallas import tpu as pltpu

_LANE = 128


def _round_up(x, m):
    return (x + m - 1) // m * m


def _tpu_vmem_capacity_bytes():
    try:
        return int(pltpu.get_tpu_info().vmem_capacity_bytes)
    except Exception:
        return 128 * 1024 * 1024          # v5e/v6e physical VMEM (conservative)


@functools.lru_cache(maxsize=1)
def _single_buffered_weights_supported():
    """One-time capability probe: lower+run a tiny kernel whose constant-index
    weight operand uses pipeline_mode=pl.Buffered(1).  Keeps the VMEM saving
    without masking errors from the real kernel."""
    try:
        w_spec = pl.BlockSpec((8, 128), lambda i: (0, 0),
                              pipeline_mode=pl.Buffered(1))

        def k(x_ref, w_ref, o_ref):
            o_ref[...] = x_ref[...] + w_ref[...]

        fn = pl.pallas_call(
            k,
            out_shape=jax.ShapeDtypeStruct((16, 128), jnp.float32),
            grid=(2,),
            in_specs=[pl.BlockSpec((8, 128), lambda i: (i, 0)), w_spec],
            out_specs=pl.BlockSpec((8, 128), lambda i: (i, 0)),
        )
        jax.block_until_ready(fn(jnp.ones((16, 128), jnp.float32),
                                 jnp.ones((8, 128), jnp.float32)))
        return True
    except Exception:
        return False


# --------------------------------------------------------------------------- #
# Kernel body
# --------------------------------------------------------------------------- #
def _mlp_kernel(n_layers, act_fn, act_dtype, *refs):
    """refs = (x, w0, b0, ..., w_{L-1}, b_{L-1}, out).

    One fused chain per row tile: MXU matmul with f32 accumulation, f32 bias
    add, activation on the hidden layers (inter-layer value travels in
    `act_dtype`, f32 or bf16), lane-dense store of the final `fc` output.
    """
    x_ref = refs[0]
    o_ref = refs[-1]
    h = x_ref[...]
    for i in range(n_layers):
        w = refs[1 + 2 * i][...]
        b = refs[2 + 2 * i][...]                      # (1, n_pad), float32
        acc = jnp.dot(h, w, preferred_element_type=jnp.float32) + b
        if i < n_layers - 1:                          # hidden: Linear + act
            h = act_fn(acc).astype(act_dtype)
        else:                                         # final fc: no activation
            h = acc
    o_ref[...] = h.astype(o_ref.dtype)


# --------------------------------------------------------------------------- #
# Host-side preparation (done once, cached by make_mlp_block)
# --------------------------------------------------------------------------- #
def prepare_mlp_params(params, weight_dtype=None):
    """Zero-pad each layer's output-feature dim to a lane multiple and cast to
    weight_dtype.  Zero padding is mathematically exact.  The input-feature dim
    is left unpadded so x can stream without an extra padded HBM copy."""
    w_dtype = (jnp.dtype(weight_dtype) if weight_dtype is not None
               else jnp.dtype(params[0][0].dtype))
    d_in = params[0][0].shape[0]
    dims_pad = [d_in] + [_round_up(w.shape[1], _LANE) for w, _ in params]
    flat = []
    for li, (w, b) in enumerate(params):
        k, n = dims_pad[li], dims_pad[li + 1]
        w_p = jnp.zeros((k, n), w_dtype).at[:w.shape[0], :w.shape[1]].set(
            w.astype(w_dtype))
        b_p = jnp.zeros((1, n), jnp.float32).at[0, :b.shape[-1]].set(
            b.astype(jnp.float32))
        flat += [w_p, b_p]
    return tuple(flat), tuple(dims_pad), w_dtype


# --------------------------------------------------------------------------- #
# Jitted forward
# --------------------------------------------------------------------------- #
def _mlp_forward(x, *wb_flat, out_dim, dims_pad, act_fn, act_dtype, row_tile,
                 use_buffered, vmem_budget_bytes, vmem_cap_bytes):
    lead = x.shape[:-1]
    d_in = x.shape[-1]
    if d_in != dims_pad[0]:
        raise ValueError(f"x last dim {d_in} != params input dim {dims_pad[0]}")
    n_layers = len(wb_flat) // 2
    out_pad = dims_pad[-1]

    x2 = x.reshape(-1, d_in).astype(act_dtype)
    m = x2.shape[0]

    # ---- row-tile selection (shapes are static under jit) -------------------
    act_itemsize = jnp.dtype(act_dtype).itemsize
    align = 16 if act_itemsize == 2 else 8          # bf16 packs 2 rows/sublane
    if m <= row_tile:
        rt = m                    # single full-height block (legal for any m)
    else:
        n_steps = pl.cdiv(m, row_tile)              # even-ish split; the extra
        rt = _round_up(pl.cdiv(m, n_steps), align)  # steps shard on v7x cores

    w_itemsize = jnp.dtype(wb_flat[0].dtype).itemsize
    n_buf = 1 if use_buffered else 2
    weight_bytes = sum(n_buf * (k * n * w_itemsize + n * 4)
                       for k, n in zip(dims_pad[:-1], dims_pad[1:]))

    def vmem_estimate(rt_):
        by = 2 * rt_ * d_in * act_itemsize            # double-buffered x tile
        by += 2 * rt_ * out_pad * x.dtype.itemsize    # double-buffered out tile
        by += weight_bytes                            # resident weights/biases
        by += 3 * rt_ * max(dims_pad) * 4             # live f32 activations
        return by

    if weight_bytes < vmem_budget_bytes:
        # Shrink the row tile only while activations are what overflows VMEM.
        while rt > align and vmem_estimate(rt) > vmem_budget_bytes:
            rt = max(align, _round_up(rt // 2, align))
    # TODO(synk): when resident weights alone exceed the VMEM budget (very
    # large hidden dims on v7x), tile the weight K/N dims with
    # pltpu.emit_pipeline instead of shrinking the row tile.
    rt = min(rt, m)
    grid = (pl.cdiv(m, rt),)

    # ---- BlockSpecs ----------------------------------------------------------
    def w_spec(shape):
        if use_buffered and shape[0] % 8 == 0 and shape[1] % _LANE == 0:
            # Constant index_map -> one buffer suffices; extra buffers waste VMEM.
            return pl.BlockSpec(shape, lambda i: (0, 0),
                                pipeline_mode=pl.Buffered(1))
        return pl.BlockSpec(shape, lambda i: (0, 0))

    in_specs = [pl.BlockSpec((rt, d_in), lambda i: (i, 0))]
    for li in range(n_layers):
        in_specs.append(w_spec(wb_flat[2 * li].shape))
        in_specs.append(pl.BlockSpec(wb_flat[2 * li + 1].shape,
                                     lambda i: (0, 0)))

    flops = 2 * m * sum(k * n for k, n in zip(dims_pad[:-1], dims_pad[1:]))
    bytes_accessed = (m * d_in * act_itemsize
                      + sum(int(a.size) * a.dtype.itemsize for a in wb_flat)
                      + m * out_pad * x.dtype.itemsize)
    cost = pl.CostEstimate(flops=int(flops), transcendentals=0,
                           bytes_accessed=int(bytes_accessed))

    vmem_limit = int(min(max(int(1.25 * vmem_estimate(rt)), 16 * 1024 * 1024),
                         vmem_cap_bytes))

    out = pl.pallas_call(
        functools.partial(_mlp_kernel, n_layers, act_fn, act_dtype),
        out_shape=jax.ShapeDtypeStruct((m, out_pad), x.dtype),
        grid_spec=pltpu.PrefetchScalarGridSpec(
            num_scalar_prefetch=0,
            grid=grid,
            in_specs=in_specs,
            out_specs=pl.BlockSpec((rt, out_pad), lambda i: (i, 0)),
        ),
        compiler_params=pltpu.CompilerParams(
            dimension_semantics=("parallel",),
            vmem_limit_bytes=vmem_limit,
        ),
        cost_estimate=cost,
    )(x2, *wb_flat)

    # Lane-dense store inside the kernel; the column slice + reshape fuse under
    # the surrounding jit (no separate host-side device copy).
    return out[:, :out_dim].reshape(*lead, out_dim)


# --------------------------------------------------------------------------- #
# Public API
# --------------------------------------------------------------------------- #
_ACTS = {"relu": lambda v: jnp.maximum(v, 0.0), "gelu": jax.nn.gelu}


def make_mlp_block(params, *, act="relu", weight_dtype=None, row_tile=512,
                   weight_buffers=1, vmem_budget_bytes=None):
    """Build a jitted forward(x) for MLPBlock.

    params: list of (W, b) with W of shape (in_features, out_features) (i.e.
    transposed vs. torch.nn.Linear storage).  The first len(params)-1 layers
    carry the activation; the last is the plain `fc`.  Weight padding/casting
    happens here, once, and is reused for every call.
    """
    wb_flat, dims_pad, w_dtype = prepare_mlp_params(params, weight_dtype)
    out_dim = params[-1][0].shape[1]
    act_fn = _ACTS[act] if isinstance(act, str) else act

    capacity = _tpu_vmem_capacity_bytes()
    vmem_cap = int(0.78 * capacity)            # ~100 MiB v5e/v6e, ~50 MiB v7x
    budget = (int(0.6 * capacity) if vmem_budget_bytes is None
              else int(vmem_budget_bytes))
    budget = min(budget, vmem_cap)

    use_buffered = (weight_buffers == 1) and _single_buffered_weights_supported()

    fwd = jax.jit(functools.partial(
        _mlp_forward, out_dim=out_dim, dims_pad=dims_pad, act_fn=act_fn,
        act_dtype=w_dtype, row_tile=row_tile, use_buffered=use_buffered,
        vmem_budget_bytes=budget, vmem_cap_bytes=vmem_cap))

    def forward(x):
        return fwd(x, *wb_flat)

    return forward


def mlp_block_pallas(x, params, **kwargs):
    """One-shot convenience wrapper; for repeated calls use make_mlp_block."""
    return make_mlp_block(params, **kwargs)(x)


def init_mlp_params(key, input_dim, hidden_dim, output_dim, num_layers,
                    dtype=jnp.float32):
    """torch.nn.Linear-style init (uniform +/- 1/sqrt(fan_in)); W is (in, out).

    Matches MLPBlock exactly: num_layers x Linear(n, hidden_dim) (+act), then
    fc = Linear(hidden_dim, output_dim) -> num_layers+1 (W, b) pairs total.
    """
    dims_in = [input_dim] + [hidden_dim] * (num_layers - 1) + [hidden_dim]
    dims_out = [hidden_dim] * num_layers + [output_dim]
    params = []
    for n_in, n_out in zip(dims_in, dims_out):
        key, kw, kb = jax.random.split(key, 3)
        bound = 1.0 / float(n_in) ** 0.5
        w = jax.random.uniform(kw, (n_in, n_out), dtype=dtype,
                               minval=-bound, maxval=bound)
        b = jax.random.uniform(kb, (n_out,), dtype=dtype,
                               minval=-bound, maxval=bound)
        params.append((w, b))
    return params


def mlp_block_reference(x, params, weight_dtype=None):
    """Pure-JAX reference of the PyTorch forward (ReLU activation)."""
    h = x
    for i, (w, b) in enumerate(params):
        if weight_dtype is not None:
            h = jnp.dot(h.astype(weight_dtype), w.astype(weight_dtype),
                        preferred_element_type=jnp.float32) + b.astype(jnp.float32)
        else:
            h = h @ w + b
        if i < len(params) - 1:
            h = jnp.maximum(h, 0.0)
    return h


if __name__ == "__main__":
    # Small shapes consistent with the module (decoder token-MLP head).
    B, N = 2, 8                 # batch, tokens -> M = 16 rows
    input_dim, hidden_dim, output_dim = 16, 32, 4
    num_layers = 3              # 3 x (Linear + ReLU), then fc

    key = jax.random.PRNGKey(0)
    key, kx = jax.random.split(key)
    x = jax.random.normal(kx, (B, N, input_dim), dtype=jnp.float32)
    params = init_mlp_params(key, input_dim, hidden_dim, output_dim, num_layers)

    # f32 path (zero padding keeps the math exact).
    fwd = make_mlp_block(params)
    out = jax.block_until_ready(fwd(x))
    ref = mlp_block_reference(x, params)
    assert out.shape == (B, N, output_dim), out.shape
    err = float(jnp.max(jnp.abs(out - ref)))
    assert jnp.allclose(out, ref, atol=1e-4, rtol=1e-4), err

    # Second call hits the jit cache (no re-padding / recompilation).
    out2 = jax.block_until_ready(fwd(x))
    assert jnp.allclose(out2, ref, atol=1e-4, rtol=1e-4)

    # bf16 weight/activation path (feeds the bf16 MXU; f32 accumulation).
    fwd_bf16 = make_mlp_block(params, weight_dtype=jnp.bfloat16)
    out_bf16 = jax.block_until_ready(fwd_bf16(x))
    ref_bf16 = mlp_block_reference(x, params, weight_dtype=jnp.bfloat16)
    err_bf16 = float(jnp.max(jnp.abs(out_bf16 - ref_bf16)))
    assert jnp.allclose(out_bf16, ref_bf16, atol=2e-2, rtol=2e-2), err_bf16

    print("KERNEL_OK")
</pallas_src>

<mosaic_0001>
module attributes {stable_mosaic.version = 11 : i64} {
  func.func @k(%arg0: i32, %arg1: memref<8x128xf32, #tpu.memory_space<vmem>>, %arg2: memref<8x128xf32, #tpu.memory_space<vmem>>, %arg3: memref<8x128xf32, #tpu.memory_space<vmem>>) attributes {dimension_semantics = [#tpu.dimension_semantics<arbitrary>], iteration_bounds = array<i64: 2>, scalar_prefetch = 0 : i64, scratch_operands = 0 : i64, tpu.core_type = #tpu.core_type<tc>, window_params = [{transform_indices = @transform_0, window_bounds = array<i64: 8, 128>}, {pipeline_mode = #tpu.pipeline_mode<synchronous>, transform_indices = @transform_1, window_bounds = array<i64: 8, 128>}, {transform_indices = @transform_2, window_bounds = array<i64: 8, 128>}]} {
    %c0 = arith.constant 0 : index
    %c0_0 = arith.constant 0 : index
    %0 = vector.load %arg1[%c0, %c0_0] : memref<8x128xf32, #tpu.memory_space<vmem>>, vector<8x128xf32>
    %c0_1 = arith.constant 0 : index
    %c0_2 = arith.constant 0 : index
    %1 = vector.load %arg2[%c0_1, %c0_2] : memref<8x128xf32, #tpu.memory_space<vmem>>, vector<8x128xf32>
    %2 = arith.addf %0, %1 : vector<8x128xf32>
    %c0_3 = arith.constant 0 : index
    %c0_4 = arith.constant 0 : index
    %3 = vector.load %arg3[%c0_3, %c0_4] : memref<8x128xf32, #tpu.memory_space<vmem>>, vector<8x128xf32>
    tpu.vector_store %arg3[%c0_3, %c0_4], %2 {strides = array<i32>} : memref<8x128xf32, #tpu.memory_space<vmem>>, vector<8x128xf32>,
    return
  }
  func.func @transform_0(%arg0: i32) -> (i32, i32) {
    %c0_i32 = arith.constant 0 : i32
    %c0_i32_0 = arith.constant 0 : i32
    return %arg0, %c0_i32 : i32, i32
  }
  func.func @transform_1(%arg0: i32) -> (i32, i32) {
    %c0_i32 = arith.constant 0 : i32
    %c0_i32_0 = arith.constant 0 : i32
    %c0_i32_1 = arith.constant 0 : i32
    return %c0_i32, %c0_i32_0 : i32, i32
  }
  func.func @transform_2(%arg0: i32) -> (i32, i32) {
    %c0_i32 = arith.constant 0 : i32
    %c0_i32_0 = arith.constant 0 : i32
    return %arg0, %c0_i32 : i32, i32
  }
}

module attributes {stable_mosaic.version = 11 : i64} {
  func.func @_mlp_kernel(%arg0: i32, %arg1: memref<16x16xf32, #tpu.memory_space<vmem>>, %arg2: memref<16x128xf32, #tpu.memory_space<vmem>>, %arg3: memref<1x128xf32, #tpu.memory_space<vmem>>, %arg4: memref<128x128xf32, #tpu.memory_space<vmem>>, %arg5: memref<1x128xf32, #tpu.memory_space<vmem>>, %arg6: memref<128x128xf32, #tpu.memory_space<vmem>>, %arg7: memref<1x128xf32, #tpu.memory_space<vmem>>, %arg8: memref<128x128xf32, #tpu.memory_space<vmem>>, %arg9: memref<1x128xf32, #tpu.memory_space<vmem>>, %arg10: memref<16x128xf32, #tpu.memory_space<vmem>>) attributes {dimension_semantics = [#tpu.dimension_semantics<parallel>], iteration_bounds = array<i64: 1>, scalar_prefetch = 0 : i64, scratch_operands = 0 : i64, tpu.core_type = #tpu.core_type<tc>, window_params = [{transform_indices = @transform_0, window_bounds = array<i64: 16, 16>}, {pipeline_mode = #tpu.pipeline_mode<synchronous>, transform_indices = @transform_1, window_bounds = array<i64: 16, 128>}, {pipeline_mode = #tpu.pipeline_mode<synchronous>, transform_indices = @transform_2, window_bounds = array<i64: 1, 128>}, {pipeline_mode = #tpu.pipeline_mode<synchronous>, transform_indices = @transform_3, window_bounds = array<i64: 128, 128>}, {pipeline_mode = #tpu.pipeline_mode<synchronous>, transform_indices = @transform_4, window_bounds = array<i64: 1, 128>}, {pipeline_mode = #tpu.pipeline_mode<synchronous>, transform_indices = @transform_5, window_bounds = array<i64: 128, 128>}, {pipeline_mode = #tpu.pipeline_mode<synchronous>, transform_indices = @transform_6, window_bounds = array<i64: 1, 128>}, {pipeline_mode = #tpu.pipeline_mode<synchronous>, transform_indices = @transform_7, window_bounds = array<i64: 128, 128>}, {pipeline_mode = #tpu.pipeline_mode<synchronous>, transform_indices = @transform_8, window_bounds = array<i64: 1, 128>}, {transform_indices = @transform_9, window_bounds = array<i64: 16, 128>}]} {
    %c0 = arith.constant 0 : index
    %c0_0 = arith.constant 0 : index
    %0 = vector.load %arg1[%c0, %c0_0] : memref<16x16xf32, #tpu.memory_space<vmem>>, vector<16x16xf32>
    %c0_1 = arith.constant 0 : index
    %c0_2 = arith.constant 0 : index
    %1 = vector.load %arg2[%c0_1, %c0_2] : memref<16x128xf32, #tpu.memory_space<vmem>>, vector<16x128xf32>
    %c0_3 = arith.constant 0 : index
    %c0_4 = arith.constant 0 : index
    %2 = vector.load %arg3[%c0_3, %c0_4] : memref<1x128xf32, #tpu.memory_space<vmem>>, vector<1x128xf32>
    %cst = arith.constant dense<0.000000e+00> : vector<16x128xf32>
    %3 = tpu.matmul %0, %1, %cst {dimension_numbers = #tpu.dot_dimension_numbers<[1], [0], [0], [1], [0, 0, 1, 1], [], []>} : vector<16x16xf32>, vector<16x128xf32>, vector<16x128xf32> -> vector<16x128xf32>
    %4 = vector.broadcast %2 : vector<1x128xf32> to vector<16x128xf32>
    %5 = arith.addf %3, %4 : vector<16x128xf32>
    %cst_5 = arith.constant 0.000000e+00 : f32
    %6 = vector.broadcast %cst_5 : f32 to vector<16x128xf32>
    %7 = arith.maximumf %5, %6 : vector<16x128xf32>
    %c0_6 = arith.constant 0 : index
    %c0_7 = arith.constant 0 : index
    %8 = vector.load %arg4[%c0_6, %c0_7] : memref<128x128xf32, #tpu.memory_space<vmem>>, vector<128x128xf32>
    %c0_8 = arith.constant 0 : index
    %c0_9 = arith.constant 0 : index
    %9 = vector.load %arg5[%c0_8, %c0_9] : memref<1x128xf32, #tpu.memory_space<vmem>>, vector<1x128xf32>
    %cst_10 = arith.constant dense<0.000000e+00> : vector<16x128xf32>
    %10 = tpu.matmul %7, %8, %cst_10 {dimension_numbers = #tpu.dot_dimension_numbers<[1], [0], [0], [1], [0, 0, 1, 1], [], []>} : vector<16x128xf32>, vector<128x128xf32>, vector<16x128xf32> -> vector<16x128xf32>
    %11 = vector.broadcast %9 : vector<1x128xf32> to vector<16x128xf32>
    %12 = arith.addf %10, %11 : vector<16x128xf32>
    %cst_11 = arith.constant 0.000000e+00 : f32
    %13 = vector.broadcast %cst_11 : f32 to vector<16x128xf32>
    %14 = arith.maximumf %12, %13 : vector<16x128xf32>
    %c0_12 = arith.constant 0 : index
    %c0_13 = arith.constant 0 : index
    %15 = vector.load %arg6[%c0_12, %c0_13] : memref<128x128xf32, #tpu.memory_space<vmem>>, vector<128x128xf32>
    %c0_14 = arith.constant 0 : index
    %c0_15 = arith.constant 0 : index
    %16 = vector.load %arg7[%c0_14, %c0_15] : memref<1x128xf32, #tpu.memory_space<vmem>>, vector<1x128xf32>
    %cst_16 = arith.constant dense<0.000000e+00> : vector<16x128xf32>
    %17 = tpu.matmul %14, %15, %cst_16 {dimension_numbers = #tpu.dot_dimension_numbers<[1], [0], [0], [1], [0, 0, 1, 1], [], []>} : vector<16x128xf32>, vector<128x128xf32>, vector<16x128xf32> -> vector<16x128xf32>
    %18 = vector.broadcast %16 : vector<1x128xf32> to vector<16x128xf32>
    %19 = arith.addf %17, %18 : vector<16x128xf32>
    %cst_17 = arith.constant 0.000000e+00 : f32
    %20 = vector.broadcast %cst_17 : f32 to vector<16x128xf32>
    %21 = arith.maximumf %19, %20 : vector<16x128xf32>
    %c0_18 = arith.constant 0 : index
    %c0_19 = arith.constant 0 : index
    %22 = vector.load %arg8[%c0_18, %c0_19] : memref<128x128xf32, #tpu.memory_space<vmem>>, vector<128x128xf32>
    %c0_20 = arith.constant 0 : index
    %c0_21 = arith.constant 0 : index
    %23 = vector.load %arg9[%c0_20, %c0_21] : memref<1x128xf32, #tpu.memory_space<vmem>>, vector<1x128xf32>
    %cst_22 = arith.constant dense<0.000000e+00> : vector<16x128xf32>
    %24 = tpu.matmul %21, %22, %cst_22 {dimension_numbers = #tpu.dot_dimension_numbers<[1], [0], [0], [1], [0, 0, 1, 1], [], []>} : vector<16x128xf32>, vector<128x128xf32>, vector<16x128xf32> -> vector<16x128xf32>
    %25 = vector.broadcast %23 : vector<1x128xf32> to vector<16x128xf32>
    %26 = arith.addf %24, %25 : vector<16x128xf32>
    %c0_23 = arith.constant 0 : index
    %c0_24 = arith.constant 0 : index
    %27 = vector.load %arg10[%c0_23, %c0_24] : memref<16x128xf32, #tpu.memory_space<vmem>>, vector<16x128xf32>
    tpu.vector_store %arg10[%c0_23, %c0_24], %26 {strides = array<i32>} : memref<16x128xf32, #tpu.memory_space<vmem>>, vector<16x128xf32>,
    return
  }
  func.func @transform_0(%arg0: i32) -> (i32, i32) {
    %c0_i32 = arith.constant 0 : i32
    %c0_i32_0 = arith.constant 0 : i32
    return %arg0, %c0_i32 : i32, i32
  }
  func.func @transform_1(%arg0: i32) -> (i32, i32) {
    %c0_i32 = arith.constant 0 : i32
    %c0_i32_0 = arith.constant 0 : i32
    %c0_i32_1 = arith.constant 0 : i32
    return %c0_i32, %c0_i32_0 : i32, i32
  }
  func.func @transform_2(%arg0: i32) -> (i32, i32) {
    %c0_i32 = arith.constant 0 : i32
    %c0_i32_0 = arith.constant 0 : i32
    %c0_i32_1 = arith.constant 0 : i32
    return %c0_i32, %c0_i32_0 : i32, i32
  }
  func.func @transform_3(%arg0: i32) -> (i32, i32) {
    %c0_i32 = arith.constant 0 : i32
    %c0_i32_0 = arith.constant 0 : i32
    %c0_i32_1 = arith.constant 0 : i32
    return %c0_i32, %c0_i32_0 : i32, i32
  }
  func.func @transform_4(%arg0: i32) -> (i32, i32) {
    %c0_i32 = arith.constant 0 : i32
    %c0_i32_0 = arith.constant 0 : i32
    %c0_i32_1 = arith.constant 0 : i32
    return %c0_i32, %c0_i32_0 : i32, i32
  }
  func.func @transform_5(%arg0: i32) -> (i32, i32) {
    %c0_i32 = arith.constant 0 : i32
    %c0_i32_0 = arith.constant 0 : i32
    %c0_i32_1 = arith.constant 0 : i32
    return %c0_i32, %c0_i32_0 : i32, i32
  }
  func.func @transform_6(%arg0: i32) -> (i32, i32) {
    %c0_i32 = arith.constant 0 : i32
    %c0_i32_0 = arith.constant 0 : i32
    %c0_i32_1 = arith.constant 0 : i32
    return %c0_i32, %c0_i32_0 : i32, i32
  }
  func.func @transform_7(%arg0: i32) -> (i32, i32) {
    %c0_i32 = arith.constant 0 : i32
    %c0_i32_0 = arith.constant 0 : i32
    %c0_i32_1 = arith.constant 0 : i32
    return %c0_i32, %c0_i32_0 : i32, i32
  }
  func.func @transform_8(%arg0: i32) -> (i32, i32) {
    %c0_i32 = arith.constant 0 : i32
    %c0_i32_0 = arith.constant 0 : i32
    %c0_i32_1 = arith.constant 0 : i32
    return %c0_i32, %c0_i32_0 : i32, i32
  }
  func.func @transform_9(%arg0: i32) -> (i32, i32) {
    %c0_i32 = arith.constant 0 : i32
    %c0_i32_0 = arith.constant 0 : i32
    return %arg0, %c0_i32 : i32, i32
  }
}

</mosaic_0001>

<llo_original>
// kernel: tpu_custom_call.1
$region0: #{tpu_custom_call.1}
  #allocation0 [shape = 'u32[]', space=smem, size = 0x4, offset = 0x4, fixed_abs, tag = 'smem constant byte address 0x4 - core index']
  #allocation1 [shape = 'u32[144,128]{1,0:T(1,128)}', space=vmem, size = 0x12000, scoped, tag = 'internal scratch']
  %s0 = inlined_call_operand.hbm [shape: f32[16,128], index: 0, kind: input, shape index: {}]
  %s1 = inlined_call_operand.hbm [shape: f32[8,128], index: 1, kind: input, shape index: {}]
  %s2 = inlined_call_operand.hbm [shape: f32[16,128], index: 2, kind: output, shape index: {}]
  %s3 = sld [smem:[#allocation0]]
  $region49: #{tpu_custom_call.1} parent=0
    _
  %s5 = ssub.s32 1, %s3
  %s6 = scalar_select 0, %s5, %s3
  $region1: #{tpu_custom_call.1} parent=0
    #allocation2 [shape = 'u8[8192]{0}', space=vmem, size = 0x2000, scoped, tag = 'input window, operand 0']
    #allocation3 [shape = 's32[2]{0}', space=sflag, size = 0x8, scoped, tag = 'scoped memory for tpu_custom_call.1']
    #allocation4 [shape = 's32[2]{0}', space=sflag, size = 0x8, scoped, tag = 'scoped memory for tpu_custom_call.1']
    #allocation5 [shape = 'u8[4096]{0}', space=vmem, size = 0x1000, scoped, tag = 'input window, operand 1, single buffered']
    #allocation6 [shape = 's32[1]{0}', space=sflag, size = 0x4, scoped, tag = 'scoped memory for tpu_custom_call.1']
    #allocation7 [shape = 'u8[8192]{0}', space=vmem, size = 0x2000, scoped, tag = 'output window, operand 0']
    %7 = vsyncpa [#allocation3], 0
    %s8 = scalar_lea.sflag [#allocation3], 1
    %9 = vsyncpa %s8, 0
    %10 = vsyncpa [#allocation6], 0
    %11 = vsyncpa [#allocation4], 0
    %s12 = scalar_lea.sflag [#allocation4], 1
    %13 = vsyncpa %s12, 0
    loop: start=0, step=1, limit=4
    $region2: #{tpu_custom_call.1} parent=1 // loop_pre_header
      _
    $region3: #{tpu_custom_call.1} parent=1 // loop_header
      %s15 = sphi 0, %s19
      %p16 = scmp.ge.s32.totalorder %s15, 4
      %s25 = sphi 0, %s27
      %s28 = sphi 0, %s25
      %s29 = sphi 0, %s28
      %s45 = sphi 0, %s29
      %s49 = sphi 0, %s49
      %s51 = sphi 0, %s49
      %s52 = sphi 0, %s51
      %s66 = sphi 0, %s52
      %s72 = sphi 0, %s74
      %s75 = sphi 0, %s72
      %s76 = sphi 0, %s75
      %s92 = sphi 0, %s76
    $region4: #{tpu_custom_call.1} parent=1 // loop_header_branch
      %18 = sbr.rel (%p16) target = $region8
    $region5: #{tpu_custom_call.1} parent=1 // loop_body
      %s20 = ssub.s32 %s15, 1
      %s21 = ssub.s32 %s15, 2
      %s22 = sadd.s32 %s15, 1
      %s23 = ssub.s32 %s15, %s22
      %p24 = scmp.eq.s32.totalorder %s23, 0
      %s26 = sadd.s32 %s25, 1
      %s27 = scalar_select %p24, %s25, %s26
      %p30 = pneg %p24
      %p31 = scmp.eq.s32.totalorder %s15, 1
      %p32 = por %p30, %p31
      %p33 = scmp.ne.s32.totalorder %s25, %s28
      %p34 = scmp.eq.s32.totalorder %s15, 0
      %p35 = por %p33, %p34
      %p36 = scmp.ne.s32.totalorder %s25, %s28
      %p37 = scmp.eq.s32.totalorder %s20, 1
      %p38 = por %p36, %p37
      %p39 = scmp.ne.s32.totalorder %s28, %s29
      %p40 = scmp.eq.s32.totalorder %s20, 0
      %p41 = por %p39, %p40
      %p42 = scmp.ne.s32.totalorder %s28, %s29
      %p43 = scmp.eq.s32.totalorder %s21, 1
      %p44 = por %p42, %p43
      %p46 = scmp.ne.s32.totalorder %s29, %s45
      %p47 = scmp.eq.s32.totalorder %s21, 0
      %p48 = por %p46, %p47
      %s50 = sadd.s32 %s49, 1
      %p53 = scmp.eq.s32.totalorder %s15, 1
      %p54 = scmp.ne.s32.totalorder %s49, %s51
      %p55 = scmp.eq.s32.totalorder %s15, 0
      %p56 = por %p54, %p55
      %p57 = scmp.ne.s32.totalorder %s49, %s51
      %p58 = scmp.eq.s32.totalorder %s20, 1
      %p59 = por %p57, %p58
      %p60 = scmp.ne.s32.totalorder %s51, %s52
      %p61 = scmp.eq.s32.totalorder %s20, 0
      %p62 = por %p60, %p61
      %p63 = scmp.ne.s32.totalorder %s51, %s52
      %p64 = scmp.eq.s32.totalorder %s21, 1
      %p65 = por %p63, %p64
      %p67 = scmp.ne.s32.totalorder %s52, %s66
      %p68 = scmp.eq.s32.totalorder %s21, 0
      %p69 = por %p67, %p68
      %s70 = ssub.s32 %s15, %s22
      %p71 = scmp.eq.s32.totalorder %s70, 0
      %s73 = sadd.s32 %s72, 1
      %s74 = scalar_select %p71, %s72, %s73
      %p77 = pneg %p71
      %p78 = scmp.eq.s32.totalorder %s15, 1
      %p79 = por %p77, %p78
      %p80 = scmp.ne.s32.totalorder %s72, %s75
      %p81 = scmp.eq.s32.totalorder %s15, 0
      %p82 = por %p80, %p81
      %p83 = scmp.ne.s32.totalorder %s72, %s75
      %p84 = scmp.eq.s32.totalorder %s20, 1
      %p85 = por %p83, %p84
      %p86 = scmp.ne.s32.totalorder %s75, %s76
      %p87 = scmp.eq.s32.totalorder %s20, 0
      %p88 = por %p86, %p87
      %p89 = scmp.ne.s32.totalorder %s75, %s76
      %p90 = scmp.eq.s32.totalorder %s21, 1
      %p91 = por %p89, %p90
      %p93 = scmp.ne.s32.totalorder %s76, %s92
      %p94 = scmp.eq.s32.totalorder %s21, 0
      %p95 = por %p93, %p94
      %p96 = scmp.le.s32.totalorder 1, %s15
      %p97 = scmp.lt.s32.totalorder %s15, 3
      %p98 = pnand %p96, %p97
      %p99 = pneg %p98
      // Predicated region
      $region9: #{tpu_custom_call.1} parent=5 // pred_check
        _
      $region10: #{tpu_custom_call.1} parent=5 // pred_check_branch
        %101 = sbr.rel (%p98) target = $region12
      $region11: #{tpu_custom_call.1} parent=5 // pred_region
        %s102 = ssub.s32 %s15, 1
        // Predicated region
        $region13: #{tpu_custom_call.1} parent=11 // pred_check
          %p103 = pneg %p62
        $region14: #{tpu_custom_call.1} parent=11 // pred_check_branch
          %105 = sbr.rel (%p103) target = $region16
        $region15: #{tpu_custom_call.1} parent=11 // pred_region
          %s107 = ssub.s32 128, 128
          %108 = vsyncadd [#allocation6], %s107
          %s110 = sshll.u32 [#allocation5], 4
          %s111 = int_to_ptr.vmem [resolvable:$true] %s110
          %113 = dma.hbm_to_vmem [thread:$0]  %s1, 128, %s111, [#allocation6]
        $region16: #{tpu_custom_call.1} parent=11 // pred_fallthru
          _
      $region12: #{tpu_custom_call.1} parent=5 // pred_fallthru
        _
      %p114 = scmp.lt.s32.totalorder %s15, 2
      // Predicated region
      $region17: #{tpu_custom_call.1} parent=5 // pred_check
        %p115 = pneg %p114
      $region18: #{tpu_custom_call.1} parent=5 // pred_check_branch
        %117 = sbr.rel (%p115) target = $region20
      $region19: #{tpu_custom_call.1} parent=5 // pred_region
        // Predicated region
        $region21: #{tpu_custom_call.1} parent=19 // pred_check
          %p118 = pneg %p35
        $region22: #{tpu_custom_call.1} parent=19 // pred_check_branch
          %120 = sbr.rel (%p118) target = $region24
        $region23: #{tpu_custom_call.1} parent=19 // pred_region
          %s121 = sand.u32 %s25, 1
          %s122 = scalar_lea.sflag [#allocation3], %s121
          %s123 = sand.u32 %s25, 1
          %s124 = smul.addr %s123, 8
          %s125 = scalar_lea.vmem [#allocation2], %s124
          %s127 = ssub.s32 128, 128
          %128 = vsyncadd %s122, %s127
          %s129 = smul.addr %s15, 128
          %s130 = scalar_lea.hbm %s0, %s129
          %s132 = sshll.u32 %s125, 4
          %s133 = int_to_ptr.vmem [resolvable:$true] %s132
          %135 = dma.hbm_to_vmem [thread:$0]  %s130, 128, %s133, %s122
        $region24: #{tpu_custom_call.1} parent=19 // pred_fallthru
          _
      $region20: #{tpu_custom_call.1} parent=5 // pred_fallthru
        _
      %p136 = scmp.le.s32.totalorder 1, %s15
      %p137 = scmp.lt.s32.totalorder %s15, 3
      %p138 = pnand %p136, %p137
      %p139 = pneg %p138
      // Predicated region
      $region25: #{tpu_custom_call.1} parent=5 // pred_check
        _
      $region26: #{tpu_custom_call.1} parent=5 // pred_check_branch
        %141 = sbr.rel (%p138) target = $region28
      $region27: #{tpu_custom_call.1} parent=5 // pred_region
        %s142 = ssub.s32 %s15, 1
        %s143 = sand.u32 %s28, 1
        %s144 = scalar_lea.sflag [#allocation3], %s143
        %s145 = sand.u32 %s28, 1
        %s146 = smul.addr %s145, 8
        %s147 = scalar_lea.vmem [#allocation2], %s146
        // Predicated region
        $region29: #{tpu_custom_call.1} parent=27 // pred_check
          %p148 = pneg %p41
        $region30: #{tpu_custom_call.1} parent=27 // pred_check_branch
          %150 = sbr.rel (%p148) target = $region32
        $region31: #{tpu_custom_call.1} parent=27 // pred_region
          %151 = dma.done %s144, 128
        $region32: #{tpu_custom_call.1} parent=27 // pred_fallthru
          _
        // Predicated region
        $region33: #{tpu_custom_call.1} parent=27 // pred_check
          %p152 = pneg %p62
        $region34: #{tpu_custom_call.1} parent=27 // pred_check_branch
          %154 = sbr.rel (%p152) target = $region36
        $region35: #{tpu_custom_call.1} parent=27 // pred_region
          %155 = dma.done [#allocation6], 128
        $region36: #{tpu_custom_call.1} parent=27 // pred_fallthru
          _
        %s156 = sand.u32 %s28, 1
        %s157 = scalar_lea.sflag [#allocation3], %s156
        %s158 = sand.u32 %s28, 1
        %s159 = smul.addr %s158, 8
        %s160 = scalar_lea.vmem [#allocation2], %s159
        %p161 = pneg %p41
        %p162 = pneg %p38
        %p163 = pneg %p62
        %p164 = pneg %p59
        %p165 = pneg %p88
        %p166 = pneg %p85
        %s167 = sand.u32 %s75, 1
        %s168 = scalar_lea.sflag [#allocation4], %s167
        %s169 = sand.u32 %s75, 1
        %s170 = smul.addr %s169, 8
        %s171 = scalar_lea.vmem [#allocation7], %s170
        %v172 = vld [vmem:[%s147] sm:$0xff]
        %v173 = vld [vmem:[#allocation5] sm:$0xff]
        %v174 = vadd.f32 %v172, %v173
        %175 = vst [vmem:[%s171] sm:$0xff] %v174
        %s176 = sand.u32 %s75, 1
        %s177 = scalar_lea.sflag [#allocation4], %s176
        %s178 = sand.u32 %s75, 1
        %s179 = smul.addr %s178, 8
        %s180 = scalar_lea.vmem [#allocation7], %s179
        // Predicated region
        $region37: #{tpu_custom_call.1} parent=27 // pred_check
          %p181 = pneg %p85
        $region38: #{tpu_custom_call.1} parent=27 // pred_check_branch
          %183 = sbr.rel (%p181) target = $region40
        $region39: #{tpu_custom_call.1} parent=27 // pred_region
          %s185 = ssub.s32 128, 128
          %186 = vsyncadd %s177, %s185
          %s187 = smul.addr %s20, 128
          %s188 = scalar_lea.hbm %s2, %s187
          %s190 = sshll.u32 %s180, 4
          %s191 = int_to_ptr.vmem [resolvable:$true] %s190
          %193 = dma.vmem_to_hbm [thread:$0]  %s191, 128, %s188, %s177
        $region40: #{tpu_custom_call.1} parent=27 // pred_fallthru
          _
      $region28: #{tpu_custom_call.1} parent=5 // pred_fallthru
        _
      %p194 = scmp.le.s32.totalorder 2, %s15
      // Predicated region
      $region41: #{tpu_custom_call.1} parent=5 // pred_check
        %p195 = pneg %p194
      $region42: #{tpu_custom_call.1} parent=5 // pred_check_branch
        %197 = sbr.rel (%p195) target = $region44
      $region43: #{tpu_custom_call.1} parent=5 // pred_region
        %s198 = ssub.s32 %s15, 2
        // Predicated region
        $region45: #{tpu_custom_call.1} parent=43 // pred_check
          %p199 = pneg %p91
        $region46: #{tpu_custom_call.1} parent=43 // pred_check_branch
          %201 = sbr.rel (%p199) target = $region48
        $region47: #{tpu_custom_call.1} parent=43 // pred_region
          %s202 = sand.u32 %s76, 1
          %s203 = scalar_lea.sflag [#allocation4], %s202
          %s204 = sand.u32 %s76, 1
          %s205 = smul.addr %s204, 8
          %s206 = scalar_lea.vmem [#allocation7], %s205
          %207 = dma.done %s203, 128
        $region48: #{tpu_custom_call.1} parent=43 // pred_fallthru
          _
      $region44: #{tpu_custom_call.1} parent=5 // pred_fallthru
        _
    $region6: #{tpu_custom_call.1} parent=1 // loop_footer
      %s19 = sadd.s32 1, %s15
    $region7: #{tpu_custom_call.1} parent=1 // loop_footer_branch
      %14 = sbr.rel target = $region3
    $region8: #{tpu_custom_call.1} parent=1 // loop_exit
      _
    %208 = vsyncpa [#allocation3], 1
    %s209 = scalar_lea.sflag [#allocation3], 1
    %210 = vsyncpa %s209, 1
    %211 = vsyncpa [#allocation6], 1
    %212 = vsyncpa [#allocation4], 1
    %s213 = scalar_lea.sflag [#allocation4], 1
    %214 = vsyncpa %s213, 1

// kernel: _mlp_forward.1
$region0: #{_mlp_forward.1}
  #allocation0 [shape = 'u32[]', space=smem, size = 0x4, offset = 0x4, fixed_abs, tag = 'smem constant byte address 0x4 - core index']
  #allocation1 [shape = 'u32[144,128]{1,0:T(1,128)}', space=vmem, size = 0x12000, scoped, tag = 'internal scratch']
  %s0 = inlined_call_operand.hbm [shape: f32[16,16], index: 0, kind: input, shape index: {}]
  %s1 = inlined_call_operand.hbm [shape: f32[16,128], index: 1, kind: input, shape index: {}]
  %s2 = inlined_call_operand.vmem [shape: f32[1,128], index: 2, kind: input, shape index: {}]
  %s3 = inlined_call_operand.hbm [shape: f32[128,128], index: 3, kind: input, shape index: {}]
  %s4 = inlined_call_operand.vmem [shape: f32[1,128], index: 4, kind: input, shape index: {}]
  %s5 = inlined_call_operand.hbm [shape: f32[128,128], index: 5, kind: input, shape index: {}]
  %s6 = inlined_call_operand.vmem [shape: f32[1,128], index: 6, kind: input, shape index: {}]
  %s7 = inlined_call_operand.hbm [shape: f32[128,128], index: 7, kind: input, shape index: {}]
  %s8 = inlined_call_operand.vmem [shape: f32[1,128], index: 8, kind: input, shape index: {}]
  %s9 = inlined_call_operand.vmem [shape: f32[16,128], index: 9, kind: output, shape index: {}]
  %s10 = sld [smem:[#allocation0]]
  $region66: #{_mlp_forward.1} parent=0
    _
  %s12 = ssub.s32 1, %s10
  %s13 = scalar_select 0, %s12, %s10
  $region1: #{_mlp_forward.1} parent=0
    #allocation2 [shape = 'u8[8192]{0}', space=vmem, size = 0x2000, scoped, tag = 'input window, operand 0, single buffered']
    #allocation3 [shape = 's32[1]{0}', space=sflag, size = 0x4, scoped, tag = 'scoped memory for _mlp_forward.1']
    #allocation4 [shape = 'u8[8192]{0}', space=vmem, size = 0x2000, scoped, tag = 'input window, operand 1, single buffered']
    #allocation5 [shape = 's32[1]{0}', space=sflag, size = 0x4, scoped, tag = 'scoped memory for _mlp_forward.1']
    #allocation6 [shape = 'u8[65536]{0}', space=vmem, size = 0x10000, scoped, tag = 'input window, operand 3, single buffered']
    #allocation7 [shape = 'u8[65536]{0}', space=vmem, size = 0x10000, scoped, tag = 'input window, operand 5, single buffered']
    #allocation8 [shape = 's32[1]{0}', space=sflag, size = 0x4, scoped, tag = 'scoped memory for _mlp_forward.1']
    #allocation9 [shape = 'u8[65536]{0}', space=vmem, size = 0x10000, scoped, tag = 'input window, operand 7, single buffered']
    %14 = vsyncpa [#allocation3], 0
    %15 = vsyncpa [#allocation5], 0
    %16 = vsyncpa [#allocation8], 0
    // Predicated region
    $region2: #{_mlp_forward.1} parent=1 // pred_check
      _
    $region3: #{_mlp_forward.1} parent=1 // pred_check_branch
      %18 = sbr.rel (0) target = $region5
    $region4: #{_mlp_forward.1} parent=1 // pred_region
      %s20 = ssub.s32 256, 256
      %21 = vsyncadd [#allocation3], %s20
      %s22 = sshll.u32 [#allocation2], 4
      %s23 = int_to_ptr.vmem [resolvable:$true] %s22
      %28 = dma.hbm_to_vmem [thread:$0]  %s0, 256, %s23, [#allocation3], 128, 128, 8
    $region5: #{_mlp_forward.1} parent=1 // pred_fallthru
      _
    // Predicated region
    $region6: #{_mlp_forward.1} parent=1 // pred_check
      _
    $region7: #{_mlp_forward.1} parent=1 // pred_check_branch
      %30 = sbr.rel (0) target = $region9
    $region8: #{_mlp_forward.1} parent=1 // pred_region
      %s32 = ssub.s32 256, 256
      %33 = vsyncadd [#allocation5], %s32
      %s34 = sshll.u32 [#allocation4], 4
      %s35 = int_to_ptr.vmem [resolvable:$true] %s34
      %40 = dma.hbm_to_vmem [thread:$0]  %s1, 256, %s35, [#allocation5], 128, 128, 8
    $region9: #{_mlp_forward.1} parent=1 // pred_fallthru
      _
    // Predicated region
    $region10: #{_mlp_forward.1} parent=1 // pred_check
      _
    $region11: #{_mlp_forward.1} parent=1 // pred_check_branch
      %42 = sbr.rel (0) target = $region13
    $region12: #{_mlp_forward.1} parent=1 // pred_region
      _
    $region13: #{_mlp_forward.1} parent=1 // pred_fallthru
      _
    // Predicated region
    $region14: #{_mlp_forward.1} parent=1 // pred_check
      _
    $region15: #{_mlp_forward.1} parent=1 // pred_check_branch
      %44 = sbr.rel (0) target = $region17
    $region16: #{_mlp_forward.1} parent=1 // pred_region
      %s46 = ssub.s32 2048, 2048
      %47 = vsyncadd [#allocation5], %s46
      %s48 = sshll.u32 [#allocation6], 4
      %s49 = int_to_ptr.vmem [resolvable:$true] %s48
      %54 = dma.hbm_to_vmem [thread:$0]  %s3, 2048, %s49, [#allocation5], 128, 128, 8
    $region17: #{_mlp_forward.1} parent=1 // pred_fallthru
      _
    // Predicated region
    $region18: #{_mlp_forward.1} parent=1 // pred_check
      _
    $region19: #{_mlp_forward.1} parent=1 // pred_check_branch
      %56 = sbr.rel (0) target = $region21
    $region20: #{_mlp_forward.1} parent=1 // pred_region
      _
    $region21: #{_mlp_forward.1} parent=1 // pred_fallthru
      _
    // Predicated region
    $region22: #{_mlp_forward.1} parent=1 // pred_check
      _
    $region23: #{_mlp_forward.1} parent=1 // pred_check_branch
      %58 = sbr.rel (0) target = $region25
    $region24: #{_mlp_forward.1} parent=1 // pred_region
      %s60 = ssub.s32 2048, 2048
      %61 = vsyncadd [#allocation8], %s60
      %s62 = sshll.u32 [#allocation7], 4
      %s63 = int_to_ptr.vmem [resolvable:$true] %s62
      %68 = dma.hbm_to_vmem [thread:$0]  %s5, 2048, %s63, [#allocation8], 128, 128, 8
    $region25: #{_mlp_forward.1} parent=1 // pred_fallthru
      _
    // Predicated region
    $region26: #{_mlp_forward.1} parent=1 // pred_check
      _
    $region27: #{_mlp_forward.1} parent=1 // pred_check_branch
      %70 = sbr.rel (0) target = $region29
    $region28: #{_mlp_forward.1} parent=1 // pred_region
      _
    $region29: #{_mlp_forward.1} parent=1 // pred_fallthru
      _
    // Predicated region
    $region30: #{_mlp_forward.1} parent=1 // pred_check
      _
    $region31: #{_mlp_forward.1} parent=1 // pred_check_branch
      %72 = sbr.rel (0) target = $region33
    $region32: #{_mlp_forward.1} parent=1 // pred_region
      %s74 = ssub.s32 2048, 2048
      %75 = vsyncadd [#allocation8], %s74
      %s76 = sshll.u32 [#allocation9], 4
      %s77 = int_to_ptr.vmem [resolvable:$true] %s76
      %82 = dma.hbm_to_vmem [thread:$0]  %s7, 2048, %s77, [#allocation8], 128, 128, 8
    $region33: #{_mlp_forward.1} parent=1 // pred_fallthru
      _
    // Predicated region
    $region34: #{_mlp_forward.1} parent=1 // pred_check
      _
    $region35: #{_mlp_forward.1} parent=1 // pred_check_branch
      %84 = sbr.rel (0) target = $region37
    $region36: #{_mlp_forward.1} parent=1 // pred_region
      _
    $region37: #{_mlp_forward.1} parent=1 // pred_fallthru
      _
    // Predicated region
    $region38: #{_mlp_forward.1} parent=1 // pred_check
      _
    $region39: #{_mlp_forward.1} parent=1 // pred_check_branch
      %86 = sbr.rel (0) target = $region41
    $region40: #{_mlp_forward.1} parent=1 // pred_region
      %87 = dma.done [#allocation3], 256
    $region41: #{_mlp_forward.1} parent=1 // pred_fallthru
      _
    // Predicated region
    $region42: #{_mlp_forward.1} parent=1 // pred_check
      _
    $region43: #{_mlp_forward.1} parent=1 // pred_check_branch
      %89 = sbr.rel (0) target = $region45
    $region44: #{_mlp_forward.1} parent=1 // pred_region
      %90 = dma.done [#allocation5], 256
    $region45: #{_mlp_forward.1} parent=1 // pred_fallthru
      _
    // Predicated region
    $region46: #{_mlp_forward.1} parent=1 // pred_check
      _
    $region47: #{_mlp_forward.1} parent=1 // pred_check_branch
      %92 = sbr.rel (0) target = $region49
    $region48: #{_mlp_forward.1} parent=1 // pred_region
      %93 = dma.done [#allocation5], 2048
    $region49: #{_mlp_forward.1} parent=1 // pred_fallthru
      _
    // Predicated region
    $region50: #{_mlp_forward.1} parent=1 // pred_check
      _
    $region51: #{_mlp_forward.1} parent=1 // pred_check_branch
      %95 = sbr.rel (0) target = $region53
    $region52: #{_mlp_forward.1} parent=1 // pred_region
      %96 = dma.done [#allocation8], 2048
    $region53: #{_mlp_forward.1} parent=1 // pred_fallthru
      _
    // Predicated region
    $region54: #{_mlp_forward.1} parent=1 // pred_check
      _
    $region55: #{_mlp_forward.1} parent=1 // pred_check_branch
      %98 = sbr.rel (0) target = $region57
    $region56: #{_mlp_forward.1} parent=1 // pred_region
      %99 = dma.done [#allocation8], 2048
    $region57: #{_mlp_forward.1} parent=1 // pred_fallthru
      _
    %v100 = vld [vmem:[#allocation2] sm:$0xff]
    %v101 = vld [vmem:[#allocation2 + $0x8] sm:$0xff]
    %v102 = vld [vmem:[#allocation4] sm:$0xff]
    %v103 = vld [vmem:[#allocation4 + $0x8] sm:$0xff]
    %v104 = vld [vmem:[%s2] sm:$0x1]
    %v106 = vlaneseq
    %v107 = vshrl.u32 %v106, 7
    %v108 = vsub.s32 0, %v107
    %v109 = vrot.slane %v104, %v108
    %vm111 = vcmask 130048
    %v113 = vsel %vm111, %v100, 0
    %v116 = vsel %vm111, %v101, 0
    %118 = vmatprep.subr.mxu0 0.0
    %119 = vmatpush1.msra.mxu0 %v102
    %120 = vmatprep.subr.mxu0 0.0
    %121 = vmatpush1.msra.mxu0 %v103
    %122 = vmatprep.subr.mxu0 0.0
    %123 = vmatpush1.msra.mxu0 0.0
    %124 = vmatprep.subr.mxu0 0.0
    %125 = vmatpush1.msra.mxu0 0.0
    %126 = vmatprep.subr.mxu0 0.0
    %127 = vmatpush1.msra.mxu0 0.0
    %128 = vmatprep.subr.mxu0 0.0
    %129 = vmatpush1.msra.mxu0 0.0
    %130 = vmatprep.subr.mxu0 0.0
    %131 = vmatpush1.msra.mxu0 0.0
    %132 = vmatprep.subr.mxu0 0.0
    %133 = vmatpush1.msra.mxu0 0.0
    %134 = vmatprep.subr.mxu0 0.0
    %135 = vmatpush1.msra.mxu0 0.0
    %136 = vmatprep.subr.mxu0 0.0
    %137 = vmatpush1.msra.mxu0 0.0
    %138 = vmatprep.subr.mxu0 0.0
    %139 = vmatpush1.msra.mxu0 0.0
    %140 = vmatprep.subr.mxu0 0.0
    %141 = vmatpush1.msra.mxu0 0.0
    %142 = vmatprep.subr.mxu0 0.0
    %143 = vmatpush1.msra.mxu0 0.0
    %144 = vmatprep.subr.mxu0 0.0
    %145 = vmatpush1.msra.mxu0 0.0
    %146 = vmatprep.subr.mxu0 0.0
    %147 = vmatpush1.msra.mxu0 0.0
    %148 = vmatprep.subr.mxu0 0.0
    %149 = vmatpush1.msra.mxu0 0.0
    %150 = vmatprep.subr.mxu0 0.0
    %151 = vmatpush1.msra.mxu0 0.0
    %152 = vmatprep.subr.mxu0 0.0
    %153 = vmatpush1.msra.mxu0 0.0
    %154 = vmatprep.subr.mxu0 0.0
    %155 = vmatpush1.msra.mxu0 0.0
    %156 = vmatprep.subr.mxu0 0.0
    %157 = vmatpush1.msra.mxu0 0.0
    %158 = vmatprep.subr.mxu0 0.0
    %159 = vmatpush1.msra.mxu0 0.0
    %160 = vmatprep.subr.mxu0 0.0
    %161 = vmatpush1.msra.mxu0 0.0
    %162 = vmatprep.subr.mxu0 0.0
    %163 = vmatpush1.msra.mxu0 0.0
    %164 = vmatprep.subr.mxu0 0.0
    %165 = vmatpush1.msra.mxu0 0.0
    %166 = vmatprep.subr.mxu0 0.0
    %167 = vmatpush1.msra.mxu0 0.0
    %168 = vmatprep.subr.mxu0 0.0
    %169 = vmatpush1.msra.mxu0 0.0
    %170 = vmatprep.subr.mxu0 0.0
    %171 = vmatpush1.msra.mxu0 0.0
    %172 = vmatprep.subr.mxu0 0.0
    %173 = vmatpush1.msra.mxu0 0.0
    %174 = vmatprep.subr.mxu0 0.0
    %175 = vmatpush1.msra.mxu0 0.0
    %176 = vmatprep.subr.mxu0 0.0
    %177 = vmatpush1.msra.mxu0 0.0
    %178 = vmatprep.subr.mxu0 0.0
    %179 = vmatpush1.msra.mxu0 0.0
    %180 = vmatprep.subr.mxu0 0.0
    %181 = vmatpush1.msra.mxu0 0.0
    %182 = vmatprep.mubr.f32.mxu0 0.0
    %183 = vmatmul.mubr.f32.gmra.mrb[0].mxu0 %v113
    %v184 = vpop.f32.mrb[0].mxu0
    %v185 = vadd.f32 %v109, %v184
    %v186 = vpop.f32.mrb[0].mxu0
    %187 = vmatprep.mubr.f32.mxu0 0.0
    %188 = vmatmul.mubr.f32.gmra.mrb[0].mxu0 %v116
    %v189 = vpop.f32.mrb[0].mxu0
    %v190 = vadd.f32 %v109, %v189
    %v191 = vpop.f32.mrb[0].mxu0
    %192 = vdwg.mxu0
    %v193 = vmax.f32 %v185, 0.0
    %v194 = vmax.f32 %v190, 0.0
    %v195 = vld [vmem:[#allocation6] sm:$0xff]
    %v196 = vld [vmem:[#allocation6 + $0x8] sm:$0xff]
    %v197 = vld [vmem:[#allocation6 + $0x10] sm:$0xff]
    %v198 = vld [vmem:[#allocation6 + $0x18] sm:$0xff]
    %v199 = vld [vmem:[#allocation6 + $0x20] sm:$0xff]
    %v200 = vld [vmem:[#allocation6 + $0x28] sm:$0xff]
    %v201 = vld [vmem:[#allocation6 + $0x30] sm:$0xff]
    %v202 = vld [vmem:[#allocation6 + $0x38] sm:$0xff]
    %v203 = vld [vmem:[#allocation6 + $0x40] sm:$0xff]
    %v204 = vld [vmem:[#allocation6 + $0x48] sm:$0xff]
    %v205 = vld [vmem:[#allocation6 + $0x50] sm:$0xff]
    %v206 = vld [vmem:[#allocation6 + $0x58] sm:$0xff]
    %v207 = vld [vmem:[#allocation6 + $0x60] sm:$0xff]
    %v208 = vld [vmem:[#allocation6 + $0x68] sm:$0xff]
    %v209 = vld [vmem:[#allocation6 + $0x70] sm:$0xff]
    %v210 = vld [vmem:[#allocation6 + $0x78] sm:$0xff]
    %v211 = vld [vmem:[%s4] sm:$0x1]
    %v213 = vlaneseq
    %v214 = vshrl.u32 %v213, 7
    %v215 = vsub.s32 0, %v214
    %v216 = vrot.slane %v211, %v215
    %218 = vmatprep.subr.mxu0 0.0
    %219 = vmatpush1.msra.mxu0 %v195
    %220 = vmatprep.subr.mxu0 0.0
    %221 = vmatpush1.msra.mxu0 %v196
    %222 = vmatprep.subr.mxu0 0.0
    %223 = vmatpush1.msra.mxu0 %v197
    %224 = vmatprep.subr.mxu0 0.0
    %225 = vmatpush1.msra.mxu0 %v198
    %226 = vmatprep.subr.mxu0 0.0
    %227 = vmatpush1.msra.mxu0 %v199
    %228 = vmatprep.subr.mxu0 0.0
    %229 = vmatpush1.msra.mxu0 %v200
    %230 = vmatprep.subr.mxu0 0.0
    %231 = vmatpush1.msra.mxu0 %v201
    %232 = vmatprep.subr.mxu0 0.0
    %233 = vmatpush1.msra.mxu0 %v202
    %234 = vmatprep.subr.mxu0 0.0
    %235 = vmatpush1.msra.mxu0 %v203
    %236 = vmatprep.subr.mxu0 0.0
    %237 = vmatpush1.msra.mxu0 %v204
    %238 = vmatprep.subr.mxu0 0.0
    %239 = vmatpush1.msra.mxu0 %v205
    %240 = vmatprep.subr.mxu0 0.0
    %241 = vmatpush1.msra.mxu0 %v206
    %242 = vmatprep.subr.mxu0 0.0
    %243 = vmatpush1.msra.mxu0 %v207
    %244 = vmatprep.subr.mxu0 0.0
    %245 = vmatpush1.msra.mxu0 %v208
    %246 = vmatprep.subr.mxu0 0.0
    %247 = vmatpush1.msra.mxu0 %v209
    %248 = vmatprep.subr.mxu0 0.0
    %249 = vmatpush1.msra.mxu0 %v210
    %250 = vmatprep.subr.mxu0 0.0
    %251 = vmatpush1.msra.mxu0 0.0
    %252 = vmatprep.subr.mxu0 0.0
    %253 = vmatpush1.msra.mxu0 0.0
    %254 = vmatprep.subr.mxu0 0.0
    %255 = vmatpush1.msra.mxu0 0.0
    %256 = vmatprep.subr.mxu0 0.0
    %257 = vmatpush1.msra.mxu0 0.0
    %258 = vmatprep.subr.mxu0 0.0
    %259 = vmatpush1.msra.mxu0 0.0
    %260 = vmatprep.subr.mxu0 0.0
    %261 = vmatpush1.msra.mxu0 0.0
    %262 = vmatprep.subr.mxu0 0.0
    %263 = vmatpush1.msra.mxu0 0.0
    %264 = vmatprep.subr.mxu0 0.0
    %265 = vmatpush1.msra.mxu0 0.0
    %266 = vmatprep.subr.mxu0 0.0
    %267 = vmatpush1.msra.mxu0 0.0
    %268 = vmatprep.subr.mxu0 0.0
    %269 = vmatpush1.msra.mxu0 0.0
    %270 = vmatprep.subr.mxu0 0.0
    %271 = vmatpush1.msra.mxu0 0.0
    %272 = vmatprep.subr.mxu0 0.0
    %273 = vmatpush1.msra.mxu0 0.0
    %274 = vmatprep.subr.mxu0 0.0
    %275 = vmatpush1.msra.mxu0 0.0
    %276 = vmatprep.subr.mxu0 0.0
    %277 = vmatpush1.msra.mxu0 0.0
    %278 = vmatprep.subr.mxu0 0.0
    %279 = vmatpush1.msra.mxu0 0.0
    %280 = vmatprep.subr.mxu0 0.0
    %281 = vmatpush1.msra.mxu0 0.0
    %282 = vmatprep.mubr.f32.mxu0 0.0
    %283 = vmatmul.mubr.f32.gmra.mrb[0].mxu0 %v193
    %v284 = vpop.f32.mrb[0].mxu0
    %v285 = vadd.f32 %v216, %v284
    %v286 = vpop.f32.mrb[0].mxu0
    %287 = vmatprep.mubr.f32.mxu0 0.0
    %288 = vmatmul.mubr.f32.gmra.mrb[0].mxu0 %v194
    %v289 = vpop.f32.mrb[0].mxu0
    %v290 = vadd.f32 %v216, %v289
    %v291 = vpop.f32.mrb[0].mxu0
    %292 = vdwg.mxu0
    %v293 = vmax.f32 %v285, 0.0
    %v294 = vmax.f32 %v290, 0.0
    %v295 = vld [vmem:[#allocation7] sm:$0xff]
    %v296 = vld [vmem:[#allocation7 + $0x8] sm:$0xff]
    %v297 = vld [vmem:[#allocation7 + $0x10] sm:$0xff]
    %v298 = vld [vmem:[#allocation7 + $0x18] sm:$0xff]
    %v299 = vld [vmem:[#allocation7 + $0x20] sm:$0xff]
    %v300 = vld [vmem:[#allocation7 + $0x28] sm:$0xff]
    %v301 = vld [vmem:[#allocation7 + $0x30] sm:$0xff]
    %v302 = vld [vmem:[#allocation7 + $0x38] sm:$0xff]
    %v303 = vld [vmem:[#allocation7 + $0x40] sm:$0xff]
    %v304 = vld [vmem:[#allocation7 + $0x48] sm:$0xff]
    %v305 = vld [vmem:[#allocation7 + $0x50] sm:$0xff]
    %v306 = vld [vmem:[#allocation7 + $0x58] sm:$0xff]
    %v307 = vld [vmem:[#allocation7 + $0x60] sm:$0xff]
    %v308 = vld [vmem:[#allocation7 + $0x68] sm:$0xff]
    %v309 = vld [vmem:[#allocation7 + $0x70] sm:$0xff]
    %v310 = vld [vmem:[#allocation7 + $0x78] sm:$0xff]
    %v311 = vld [vmem:[%s6] sm:$0x1]
    %v313 = vlaneseq
    %v314 = vshrl.u32 %v313, 7
    %v315 = vsub.s32 0, %v314
    %v316 = vrot.slane %v311, %v315
    %318 = vmatprep.subr.mxu0 0.0
    %319 = vmatpush1.msra.mxu0 %v295
    %320 = vmatprep.subr.mxu0 0.0
    %321 = vmatpush1.msra.mxu0 %v296
    %322 = vmatprep.subr.mxu0 0.0
    %323 = vmatpush1.msra.mxu0 %v297
    %324 = vmatprep.subr.mxu0 0.0
    %325 = vmatpush1.msra.mxu0 %v298
    %326 = vmatprep.subr.mxu0 0.0
    %327 = vmatpush1.msra.mxu0 %v299
    %328 = vmatprep.subr.mxu0 0.0
    %329 = vmatpush1.msra.mxu0 %v300
    %330 = vmatprep.subr.mxu0 0.0
    %331 = vmatpush1.msra.mxu0 %v301
    %332 = vmatprep.subr.mxu0 0.0
    %333 = vmatpush1.msra.mxu0 %v302
    %334 = vmatprep.subr.mxu0 0.0
    %335 = vmatpush1.msra.mxu0 %v303
    %336 = vmatprep.subr.mxu0 0.0
    %337 = vmatpush1.msra.mxu0 %v304
    %338 = vmatprep.subr.mxu0 0.0
    %339 = vmatpush1.msra.mxu0 %v305
    %340 = vmatprep.subr.mxu0 0.0
    %341 = vmatpush1.msra.mxu0 %v306
    %342 = vmatprep.subr.mxu0 0.0
    %343 = vmatpush1.msra.mxu0 %v307
    %344 = vmatprep.subr.mxu0 0.0
    %345 = vmatpush1.msra.mxu0 %v308
    %346 = vmatprep.subr.mxu0 0.0
    %347 = vmatpush1.msra.mxu0 %v309
    %348 = vmatprep.subr.mxu0 0.0
    %349 = vmatpush1.msra.mxu0 %v310
    %350 = vmatprep.subr.mxu0 0.0
    %351 = vmatpush1.msra.mxu0 0.0
    %352 = vmatprep.subr.mxu0 0.0
    %353 = vmatpush1.msra.mxu0 0.0
    %354 = vmatprep.subr.mxu0 0.0
    %355 = vmatpush1.msra.mxu0 0.0
    %356 = vmatprep.subr.mxu0 0.0
    %357 = vmatpush1.msra.mxu0 0.0
    %358 = vmatprep.subr.mxu0 0.0
    %359 = vmatpush1.msra.mxu0 0.0
    %360 = vmatprep.subr.mxu0 0.0
    %361 = vmatpush1.msra.mxu0 0.0
    %362 = vmatprep.subr.mxu0 0.0
    %363 = vmatpush1.msra.mxu0 0.0
    %364 = vmatprep.subr.mxu0 0.0
    %365 = vmatpush1.msra.mxu0 0.0
    %366 = vmatprep.subr.mxu0 0.0
    %367 = vmatpush1.msra.mxu0 0.0
    %368 = vmatprep.subr.mxu0 0.0
    %369 = vmatpush1.msra.mxu0 0.0
    %370 = vmatprep.subr.mxu0 0.0
    %371 = vmatpush1.msra.mxu0 0.0
    %372 = vmatprep.subr.mxu0 0.0
    %373 = vmatpush1.msra.mxu0 0.0
    %374 = vmatprep.subr.mxu0 0.0
    %375 = vmatpush1.msra.mxu0 0.0
    %376 = vmatprep.subr.mxu0 0.0
    %377 = vmatpush1.msra.mxu0 0.0
    %378 = vmatprep.subr.mxu0 0.0
    %379 = vmatpush1.msra.mxu0 0.0
    %380 = vmatprep.subr.mxu0 0.0
    %381 = vmatpush1.msra.mxu0 0.0
    %382 = vmatprep.mubr.f32.mxu0 0.0
    %383 = vmatmul.mubr.f32.gmra.mrb[0].mxu0 %v293
    %v384 = vpop.f32.mrb[0].mxu0
    %v385 = vadd.f32 %v316, %v384
    %v386 = vpop.f32.mrb[0].mxu0
    %387 = vmatprep.mubr.f32.mxu0 0.0
    %388 = vmatmul.mubr.f32.gmra.mrb[0].mxu0 %v294
    %v389 = vpop.f32.mrb[0].mxu0
    %v390 = vadd.f32 %v316, %v389
    %v391 = vpop.f32.mrb[0].mxu0
    %392 = vdwg.mxu0
    %v393 = vmax.f32 %v385, 0.0
    %v394 = vmax.f32 %v390, 0.0
    %v395 = vld [vmem:[#allocation9] sm:$0xff]
    %v396 = vld [vmem:[#allocation9 + $0x8] sm:$0xff]
    %v397 = vld [vmem:[#allocation9 + $0x10] sm:$0xff]
    %v398 = vld [vmem:[#allocation9 + $0x18] sm:$0xff]
    %v399 = vld [vmem:[#allocation9 + $0x20] sm:$0xff]
    %v400 = vld [vmem:[#allocation9 + $0x28] sm:$0xff]
    %v401 = vld [vmem:[#allocation9 + $0x30] sm:$0xff]
    %v402 = vld [vmem:[#allocation9 + $0x38] sm:$0xff]
    %v403 = vld [vmem:[#allocation9 + $0x40] sm:$0xff]
    %v404 = vld [vmem:[#allocation9 + $0x48] sm:$0xff]
    %v405 = vld [vmem:[#allocation9 + $0x50] sm:$0xff]
    %v406 = vld [vmem:[#allocation9 + $0x58] sm:$0xff]
    %v407 = vld [vmem:[#allocation9 + $0x60] sm:$0xff]
    %v408 = vld [vmem:[#allocation9 + $0x68] sm:$0xff]
    %v409 = vld [vmem:[#allocation9 + $0x70] sm:$0xff]
    %v410 = vld [vmem:[#allocation9 + $0x78] sm:$0xff]
    %v411 = vld [vmem:[%s8] sm:$0x1]
    %v413 = vlaneseq
    %v414 = vshrl.u32 %v413, 7
    %v415 = vsub.s32 0, %v414
    %v416 = vrot.slane %v411, %v415
    %418 = vmatprep.subr.mxu0 0.0
    %419 = vmatpush1.msra.mxu0 %v395
    %420 = vmatprep.subr.mxu0 0.0
    %421 = vmatpush1.msra.mxu0 %v396
    %422 = vmatprep.subr.mxu0 0.0
    %423 = vmatpush1.msra.mxu0 %v397
    %424 = vmatprep.subr.mxu0 0.0
    %425 = vmatpush1.msra.mxu0 %v398
    %426 = vmatprep.subr.mxu0 0.0
    %427 = vmatpush1.msra.mxu0 %v399
    %428 = vmatprep.subr.mxu0 0.0
    %429 = vmatpush1.msra.mxu0 %v400
    %430 = vmatprep.subr.mxu0 0.0
    %431 = vmatpush1.msra.mxu0 %v401
    %432 = vmatprep.subr.mxu0 0.0
    %433 = vmatpush1.msra.mxu0 %v402
    %434 = vmatprep.subr.mxu0 0.0
    %435 = vmatpush1.msra.mxu0 %v403
    %436 = vmatprep.subr.mxu0 0.0
    %437 = vmatpush1.msra.mxu0 %v404
    %438 = vmatprep.subr.mxu0 0.0
    %439 = vmatpush1.msra.mxu0 %v405
    %440 = vmatprep.subr.mxu0 0.0
    %441 = vmatpush1.msra.mxu0 %v406
    %442 = vmatprep.subr.mxu0 0.0
    %443 = vmatpush1.msra.mxu0 %v407
    %444 = vmatprep.subr.mxu0 0.0
    %445 = vmatpush1.msra.mxu0 %v408
    %446 = vmatprep.subr.mxu0 0.0
    %447 = vmatpush1.msra.mxu0 %v409
    %448 = vmatprep.subr.mxu0 0.0
    %449 = vmatpush1.msra.mxu0 %v410
    %450 = vmatprep.subr.mxu0 0.0
    %451 = vmatpush1.msra.mxu0 0.0
    %452 = vmatprep.subr.mxu0 0.0
    %453 = vmatpush1.msra.mxu0 0.0
    %454 = vmatprep.subr.mxu0 0.0
    %455 = vmatpush1.msra.mxu0 0.0
    %456 = vmatprep.subr.mxu0 0.0
    %457 = vmatpush1.msra.mxu0 0.0
    %458 = vmatprep.subr.mxu0 0.0
    %459 = vmatpush1.msra.mxu0 0.0
    %460 = vmatprep.subr.mxu0 0.0
    %461 = vmatpush1.msra.mxu0 0.0
    %462 = vmatprep.subr.mxu0 0.0
    %463 = vmatpush1.msra.mxu0 0.0
    %464 = vmatprep.subr.mxu0 0.0
    %465 = vmatpush1.msra.mxu0 0.0
    %466 = vmatprep.subr.mxu0 0.0
    %467 = vmatpush1.msra.mxu0 0.0
    %468 = vmatprep.subr.mxu0 0.0
    %469 = vmatpush1.msra.mxu0 0.0
    %470 = vmatprep.subr.mxu0 0.0
    %471 = vmatpush1.msra.mxu0 0.0
    %472 = vmatprep.subr.mxu0 0.0
    %473 = vmatpush1.msra.mxu0 0.0
    %474 = vmatprep.subr.mxu0 0.0
    %475 = vmatpush1.msra.mxu0 0.0
    %476 = vmatprep.subr.mxu0 0.0
    %477 = vmatpush1.msra.mxu0 0.0
    %478 = vmatprep.subr.mxu0 0.0
    %479 = vmatpush1.msra.mxu0 0.0
    %480 = vmatprep.subr.mxu0 0.0
    %481 = vmatpush1.msra.mxu0 0.0
    %482 = vmatprep.mubr.f32.mxu0 0.0
    %483 = vmatmul.mubr.f32.gmra.mrb[0].mxu0 %v393
    %v484 = vpop.f32.mrb[0].mxu0
    %v485 = vadd.f32 %v416, %v484
    %v486 = vpop.f32.mrb[0].mxu0
    %487 = vmatprep.mubr.f32.mxu0 0.0
    %488 = vmatmul.mubr.f32.gmra.mrb[0].mxu0 %v394
    %v489 = vpop.f32.mrb[0].mxu0
    %v490 = vadd.f32 %v416, %v489
    %v491 = vpop.f32.mrb[0].mxu0
    %492 = vdwg.mxu0
    %493 = vst [vmem:[%s9] sm:$0xff] %v485
    %494 = vst [vmem:[%s9 + $0x8] sm:$0xff] %v490
    // Predicated region
    $region58: #{_mlp_forward.1} parent=1 // pred_check
      _
    $region59: #{_mlp_forward.1} parent=1 // pred_check_branch
      %496 = sbr.rel (0) target = $region61
    $region60: #{_mlp_forward.1} parent=1 // pred_region
      _
    $region61: #{_mlp_forward.1} parent=1 // pred_fallthru
      _
    // Predicated region
    $region62: #{_mlp_forward.1} parent=1 // pred_check
      _
    $region63: #{_mlp_forward.1} parent=1 // pred_check_branch
      %498 = sbr.rel (0) target = $region65
    $region64: #{_mlp_forward.1} parent=1 // pred_region
      _
    $region65: #{_mlp_forward.1} parent=1 // pred_fallthru
      _
    %499 = vsyncpa [#allocation3], 1
    %500 = vsyncpa [#allocation5], 1
    %501 = vsyncpa [#allocation8], 1

</llo_original>
